<compile_context>
chip_gen: v5e
topology: v5e:2x2
jax: 0.10.0
libtpu: 0.0.40
codegen_flags: <defaults>
</compile_context>

<pallas_src>
import functools
import math

import jax
import jax.numpy as jnp
from jax.experimental import pallas as pl
from jax.experimental.pallas import tpu as pltpu

_LOG_EPS = math.log(1e-8)                 # matches torch's log(0 + 1e-8) clamp
_INT_MAX = jnp.iinfo(jnp.int32).max

# Batch-tile cap (multiple of 8).  Sized so the f32 hidden activations plus
# their bf16 copies for hidden=[512,512] stay ~8 MiB -- inside v5e's 16 MiB
# default scoped VMEM and far inside v6e (128 MiB) / v7x (64 MiB) budgets.
# Re-derive (smaller) if hidden_size grows to ~2048, especially on v7x.
_TB_CAP = 1024


def _actor_kernel(x_ref, g_ref, w1_ref, b1_ref, w2_ref, b2_ref, w3_ref,
                  b3_ref, probs_ref, logp_ref, action_ref, tmax_ref, targ_ref,
                  *, batch, tile, num_actions):
    i = pl.program_id(0)

    # ---- MLP: bf16 operands on the MXU, f32 accumulation / elementwise ----
    h1 = jnp.dot(x_ref[...], w1_ref[...],
                 preferred_element_type=jnp.float32) + b1_ref[...]
    h1 = jnp.maximum(h1, 0.0)
    h2 = jnp.dot(h1.astype(jnp.bfloat16), w2_ref[...],
                 preferred_element_type=jnp.float32) + b2_ref[...]
    h2 = jnp.maximum(h2, 0.0)
    logits = jnp.dot(h2.astype(jnp.bfloat16), w3_ref[...],
                     preferred_element_type=jnp.float32) + b3_ref[...]

    # ---- Softmax (numerically stable, exact) + log-probs ----
    m = jnp.max(logits, axis=-1, keepdims=True)
    shifted = logits - m
    e = jnp.exp(shifted)
    denom = jnp.sum(e, axis=-1, keepdims=True)
    probs = e / denom                       # exact: exp(logp) == probs, argmax parity
    probs_ref[...] = probs

    logp = shifted - jnp.log(denom)         # one (tile,1) log only
    logp_ref[...] = jnp.where(probs == 0.0, jnp.float32(_LOG_EPS), logp)

    # ---- Categorical(action_probs).sample() via Gumbel-max, one per row ----
    z = shifted + g_ref[...]                # wrapper-supplied Gumbel noise
    col = jax.lax.broadcasted_iota(jnp.int32, (tile, num_actions), 1)
    z_max = jnp.max(z, axis=-1, keepdims=True)
    action_ref[...] = jnp.min(jnp.where(z == z_max, col, num_actions),
                              axis=-1, keepdims=True)

    # ---- torch.argmax(action_probs): per-tile candidates only (no cross-tile
    # scratch carry), so the grid stays "parallel" across TensorCores.
    row = jax.lax.broadcasted_iota(jnp.int32, (tile, num_actions), 0) + i * tile
    masked = jnp.where(row < batch, probs, -1.0)        # mask padded rows
    tile_max = jnp.max(jnp.max(masked, axis=-1, keepdims=True),
                       axis=0, keepdims=True)           # (1, 1)
    flat_idx = row * num_actions + col
    cand = jnp.where(masked == tile_max, flat_idx, _INT_MAX)
    cand_idx = jnp.min(jnp.min(cand, axis=-1, keepdims=True),
                       axis=0, keepdims=True)           # first occurrence
    tmax_ref[...] = tile_max.reshape(1, 1, 1)
    targ_ref[...] = cand_idx.reshape(1, 1, 1)


def _batch_tiling(batch):
    if batch <= _TB_CAP:
        return batch, batch                 # single tile covering the full batch
    padded = pl.cdiv(batch, _TB_CAP) * _TB_CAP
    return _TB_CAP, padded


def _resident_spec(shape):
    # Constant-index operand: single-buffered (no point double-buffering a DMA
    # that never changes) -> halves its VMEM footprint.
    return pl.BlockSpec(shape, lambda i: (0, 0), pipeline_mode=pl.Buffered(1))


@jax.jit
def actor_forward(state, params, key):
    """Full Actor.forward: (action, (action_probs, log_action_probs), max_probability_action)."""
    w1, b1, w2, b2, w3, b3 = params
    B, obs = state.shape
    H1, H2, A = w1.shape[1], w2.shape[1], w3.shape[1]

    tb, b_pad = _batch_tiling(B)
    num_tiles = b_pad // tb

    # Pre-cast state to bf16 (halves state DMA) and pad the batch to the tile.
    x = state.astype(jnp.bfloat16)
    if b_pad != B:
        x = jnp.pad(x, ((0, b_pad - B), (0, 0)))
    gumbel = jax.random.gumbel(key, (b_pad, A), jnp.float32)

    # TODO(synk): for the B~1 per-step RL inference path, keep w1..b3 resident
    # in VMEM across calls (cross-pallas_call future, P10) instead of
    # re-DMAing ~0.5 MiB of weights every launch; that DMA + launch latency
    # dominates at tiny batch on every TPU generation.

    kernel = functools.partial(_actor_kernel, batch=B, tile=tb, num_actions=A)

    grid_spec = pltpu.PrefetchScalarGridSpec(
        num_scalar_prefetch=0,
        grid=(num_tiles,),
        in_specs=[
            pl.BlockSpec((tb, obs), lambda i: (i, 0)),       # state (bf16)
            pl.BlockSpec((tb, A), lambda i: (i, 0)),         # gumbel noise
            _resident_spec(w1.shape), _resident_spec(b1.shape),
            _resident_spec(w2.shape), _resident_spec(b2.shape),
            _resident_spec(w3.shape), _resident_spec(b3.shape),
        ],
        out_specs=(
            pl.BlockSpec((tb, A), lambda i: (i, 0)),         # probs
            pl.BlockSpec((tb, A), lambda i: (i, 0)),         # log probs
            pl.BlockSpec((tb, 1), lambda i: (i, 0)),         # sampled action
            pl.BlockSpec((1, 1, 1), lambda i: (i, 0, 0)),    # per-tile max prob
            pl.BlockSpec((1, 1, 1), lambda i: (i, 0, 0)),    # per-tile argmax cand
        ),
    )

    flops = 2 * B * (obs * H1 + H1 * H2 + H2 * A)
    transcendentals = B * (A + 1)
    bytes_accessed = (x.size * 2 + gumbel.size * 4
                      + (w1.size + w2.size + w3.size) * 2
                      + (b1.size + b2.size + b3.size) * 4
                      + b_pad * A * 8 + b_pad * 4 + num_tiles * 8)

    probs_p, logp_p, action_p, tmax, targ = pl.pallas_call(
        kernel,
        out_shape=(
            jax.ShapeDtypeStruct((b_pad, A), jnp.float32),
            jax.ShapeDtypeStruct((b_pad, A), jnp.float32),
            jax.ShapeDtypeStruct((b_pad, 1), jnp.int32),
            jax.ShapeDtypeStruct((num_tiles, 1, 1), jnp.float32),
            jax.ShapeDtypeStruct((num_tiles, 1, 1), jnp.int32),
        ),
        grid_spec=grid_spec,
        # No cross-tile carry anymore -> fully parallel (megacore-shardable).
        compiler_params=pltpu.CompilerParams(dimension_semantics=("parallel",)),
        cost_estimate=pl.CostEstimate(flops=flops,
                                      transcendentals=transcendentals,
                                      bytes_accessed=bytes_accessed),
    )(x, gumbel, w1, b1, w2, b2, w3, b3)

    action_probs = probs_p[:B] if b_pad != B else probs_p
    log_action_probs = logp_p[:B] if b_pad != B else logp_p
    action = action_p[:B, 0]

    # Final flat-argmax reduction over the handful of per-tile candidates.
    tile_max = tmax[:, 0, 0]
    tile_arg = targ[:, 0, 0]
    gmax = jnp.max(tile_max)
    max_probability_action = jnp.min(
        jnp.where(tile_max == gmax, tile_arg, _INT_MAX))

    return action, (action_probs, log_action_probs), max_probability_action


def init_params(key, observation_size, num_actions, hidden_size):
    """PyTorch nn.Linear-style init (uniform +-1/sqrt(fan_in)); weights bf16."""
    sizes = [observation_size, hidden_size[0], hidden_size[1], num_actions]
    params = []
    for i in range(3):
        key, kw, kb = jax.random.split(key, 3)
        fan_in, fan_out = sizes[i], sizes[i + 1]
        bound = 1.0 / math.sqrt(fan_in)
        w = jax.random.uniform(kw, (fan_in, fan_out), jnp.float32, -bound, bound)
        b = jax.random.uniform(kb, (1, fan_out), jnp.float32, -bound, bound)
        params += [w.astype(jnp.bfloat16), b]   # bf16 weights, f32 biases
    return tuple(params)


if __name__ == "__main__":
    observation_size = 16
    num_actions = 8
    hidden_size = [128, 128]   # small-shape stand-in for the default [512, 512]
    batch = 2

    root = jax.random.PRNGKey(0)
    k_params, k_state, k_sample = jax.random.split(root, 3)

    params = init_params(k_params, observation_size, num_actions, hidden_size)
    state = jax.random.normal(k_state, (batch, observation_size), jnp.float32)

    action, (action_probs, log_action_probs), max_probability_action = actor_forward(
        state, params, k_sample)

    jax.block_until_ready((action, action_probs, log_action_probs,
                           max_probability_action))

    # Sanity checks (loose tolerances: bf16 matmul inputs).
    assert jnp.allclose(jnp.sum(action_probs, axis=-1), 1.0, atol=1e-3)
    assert jnp.allclose(jnp.exp(log_action_probs), action_probs, atol=1e-4)
    assert action.shape == (batch,)
    assert bool(jnp.all((action >= 0) & (action < num_actions)))
    assert action_probs.shape == (batch, num_actions)
    assert log_action_probs.shape == (batch, num_actions)
    assert max_probability_action.shape == ()
    assert int(max_probability_action) == int(jnp.argmax(action_probs))

    print("KERNEL_OK")
</pallas_src>

<mosaic_0001>
module attributes {stable_mosaic.version = 11 : i64} {
  func.func @_actor_kernel(%arg0: i32, %arg1: memref<2x16xbf16, #tpu.memory_space<vmem>>, %arg2: memref<2x8xf32, #tpu.memory_space<vmem>>, %arg3: memref<16x128xbf16, #tpu.memory_space<vmem>>, %arg4: memref<1x128xf32, #tpu.memory_space<vmem>>, %arg5: memref<128x128xbf16, #tpu.memory_space<vmem>>, %arg6: memref<1x128xf32, #tpu.memory_space<vmem>>, %arg7: memref<128x8xbf16, #tpu.memory_space<vmem>>, %arg8: memref<1x8xf32, #tpu.memory_space<vmem>>, %arg9: memref<2x8xf32, #tpu.memory_space<vmem>>, %arg10: memref<2x8xf32, #tpu.memory_space<vmem>>, %arg11: memref<2x1xi32, #tpu.memory_space<vmem>>, %arg12: memref<1x1x1xf32, #tpu.memory_space<vmem>>, %arg13: memref<1x1x1xi32, #tpu.memory_space<vmem>>) attributes {dimension_semantics = [#tpu.dimension_semantics<parallel>], iteration_bounds = array<i64: 1>, scalar_prefetch = 0 : i64, scratch_operands = 0 : i64, tpu.core_type = #tpu.core_type<tc>, window_params = [{transform_indices = @transform_0, window_bounds = array<i64: 2, 16>}, {transform_indices = @transform_1, window_bounds = array<i64: 2, 8>}, {pipeline_mode = #tpu.pipeline_mode<synchronous>, transform_indices = @transform_2, window_bounds = array<i64: 16, 128>}, {pipeline_mode = #tpu.pipeline_mode<synchronous>, transform_indices = @transform_3, window_bounds = array<i64: 1, 128>}, {pipeline_mode = #tpu.pipeline_mode<synchronous>, transform_indices = @transform_4, window_bounds = array<i64: 128, 128>}, {pipeline_mode = #tpu.pipeline_mode<synchronous>, transform_indices = @transform_5, window_bounds = array<i64: 1, 128>}, {pipeline_mode = #tpu.pipeline_mode<synchronous>, transform_indices = @transform_6, window_bounds = array<i64: 128, 8>}, {pipeline_mode = #tpu.pipeline_mode<synchronous>, transform_indices = @transform_7, window_bounds = array<i64: 1, 8>}, {transform_indices = @transform_8, window_bounds = array<i64: 2, 8>}, {transform_indices = @transform_9, window_bounds = array<i64: 2, 8>}, {transform_indices = @transform_10, window_bounds = array<i64: 2, 1>}, {transform_indices = @transform_11, window_bounds = array<i64: 1, 1, 1>}, {transform_indices = @transform_12, window_bounds = array<i64: 1, 1, 1>}]} {
    %c0 = arith.constant 0 : index
    %c0_0 = arith.constant 0 : index
    %0 = vector.load %arg1[%c0, %c0_0] : memref<2x16xbf16, #tpu.memory_space<vmem>>, vector<2x16xbf16>
    %c0_1 = arith.constant 0 : index
    %c0_2 = arith.constant 0 : index
    %1 = vector.load %arg3[%c0_1, %c0_2] : memref<16x128xbf16, #tpu.memory_space<vmem>>, vector<16x128xbf16>
    %cst = arith.constant dense<0.000000e+00> : vector<2x128xf32>
    %2 = tpu.matmul %0, %1, %cst {dimension_numbers = #tpu.dot_dimension_numbers<[1], [0], [0], [1], [0, 0, 1, 1], [], []>} : vector<2x16xbf16>, vector<16x128xbf16>, vector<2x128xf32> -> vector<2x128xf32>
    %c0_3 = arith.constant 0 : index
    %c0_4 = arith.constant 0 : index
    %3 = vector.load %arg4[%c0_3, %c0_4] : memref<1x128xf32, #tpu.memory_space<vmem>>, vector<1x128xf32>
    %4 = vector.broadcast %3 : vector<1x128xf32> to vector<2x128xf32>
    %5 = arith.addf %2, %4 : vector<2x128xf32>
    %cst_5 = arith.constant 0.000000e+00 : f32
    %6 = vector.broadcast %cst_5 : f32 to vector<2x128xf32>
    %7 = arith.maximumf %5, %6 : vector<2x128xf32>
    %8 = arith.truncf %7 : vector<2x128xf32> to vector<2x128xbf16>
    %c0_6 = arith.constant 0 : index
    %c0_7 = arith.constant 0 : index
    %9 = vector.load %arg5[%c0_6, %c0_7] : memref<128x128xbf16, #tpu.memory_space<vmem>>, vector<128x128xbf16>
    %cst_8 = arith.constant dense<0.000000e+00> : vector<2x128xf32>
    %10 = tpu.matmul %8, %9, %cst_8 {dimension_numbers = #tpu.dot_dimension_numbers<[1], [0], [0], [1], [0, 0, 1, 1], [], []>} : vector<2x128xbf16>, vector<128x128xbf16>, vector<2x128xf32> -> vector<2x128xf32>
    %c0_9 = arith.constant 0 : index
    %c0_10 = arith.constant 0 : index
    %11 = vector.load %arg6[%c0_9, %c0_10] : memref<1x128xf32, #tpu.memory_space<vmem>>, vector<1x128xf32>
    %12 = vector.broadcast %11 : vector<1x128xf32> to vector<2x128xf32>
    %13 = arith.addf %10, %12 : vector<2x128xf32>
    %cst_11 = arith.constant 0.000000e+00 : f32
    %14 = vector.broadcast %cst_11 : f32 to vector<2x128xf32>
    %15 = arith.maximumf %13, %14 : vector<2x128xf32>
    %16 = arith.truncf %15 : vector<2x128xf32> to vector<2x128xbf16>
    %c0_12 = arith.constant 0 : index
    %c0_13 = arith.constant 0 : index
    %17 = vector.load %arg7[%c0_12, %c0_13] : memref<128x8xbf16, #tpu.memory_space<vmem>>, vector<128x8xbf16>
    %cst_14 = arith.constant dense<0.000000e+00> : vector<2x8xf32>
    %18 = tpu.matmul %16, %17, %cst_14 {dimension_numbers = #tpu.dot_dimension_numbers<[1], [0], [0], [1], [0, 0, 1, 1], [], []>} : vector<2x128xbf16>, vector<128x8xbf16>, vector<2x8xf32> -> vector<2x8xf32>
    %c0_15 = arith.constant 0 : index
    %c0_16 = arith.constant 0 : index
    %19 = vector.load %arg8[%c0_15, %c0_16] : memref<1x8xf32, #tpu.memory_space<vmem>>, vector<1x8xf32>
    %20 = vector.broadcast %19 : vector<1x8xf32> to vector<2x8xf32>
    %21 = arith.addf %18, %20 : vector<2x8xf32>
    %cst_17 = arith.constant dense<0xFF800000> : vector<2xf32>
    %22 = vector.multi_reduction <maximumf>, %21, %cst_17 [1] : vector<2x8xf32> to vector<2xf32>
    %23 = vector.shape_cast %22 : vector<2xf32> to vector<2x1xf32>
    %24 = vector.broadcast %23 : vector<2x1xf32> to vector<2x8xf32>
    %25 = arith.subf %21, %24 : vector<2x8xf32>
    %26 = math.exp %25 : vector<2x8xf32>
    %cst_18 = arith.constant dense<0.000000e+00> : vector<2xf32>
    %27 = vector.multi_reduction <add>, %26, %cst_18 [1] : vector<2x8xf32> to vector<2xf32>
    %28 = vector.shape_cast %27 : vector<2xf32> to vector<2x1xf32>
    %29 = vector.broadcast %28 : vector<2x1xf32> to vector<2x8xf32>
    %30 = arith.divf %26, %29 : vector<2x8xf32>
    %c0_19 = arith.constant 0 : index
    %c0_20 = arith.constant 0 : index
    %31 = vector.load %arg9[%c0_19, %c0_20] : memref<2x8xf32, #tpu.memory_space<vmem>>, vector<2x8xf32>
    tpu.vector_store %arg9[%c0_19, %c0_20], %30 {strides = array<i32>} : memref<2x8xf32, #tpu.memory_space<vmem>>, vector<2x8xf32>,
    %32 = math.log %28 : vector<2x1xf32>
    %33 = vector.broadcast %32 : vector<2x1xf32> to vector<2x8xf32>
    %34 = arith.subf %25, %33 : vector<2x8xf32>
    %cst_21 = arith.constant 0.000000e+00 : f32
    %35 = vector.broadcast %cst_21 : f32 to vector<2x8xf32>
    %36 = arith.cmpf oeq, %30, %35 : vector<2x8xf32>
    %cst_22 = arith.constant -18.420681 : f32
    %37 = vector.broadcast %cst_22 : f32 to vector<2x8xf32>
    %38 = arith.select %36, %37, %34 : vector<2x8xi1>, vector<2x8xf32>
    %c0_23 = arith.constant 0 : index
    %c0_24 = arith.constant 0 : index
    %39 = vector.load %arg10[%c0_23, %c0_24] : memref<2x8xf32, #tpu.memory_space<vmem>>, vector<2x8xf32>
    tpu.vector_store %arg10[%c0_23, %c0_24], %38 {strides = array<i32>} : memref<2x8xf32, #tpu.memory_space<vmem>>, vector<2x8xf32>,
    %c0_25 = arith.constant 0 : index
    %c0_26 = arith.constant 0 : index
    %40 = vector.load %arg2[%c0_25, %c0_26] : memref<2x8xf32, #tpu.memory_space<vmem>>, vector<2x8xf32>
    %41 = arith.addf %25, %40 : vector<2x8xf32>
    %42 = tpu.iota {dimensions = array<i32: 1>} : vector<2x8xi32>
    %cst_27 = arith.constant dense<0xFF800000> : vector<2xf32>
    %43 = vector.multi_reduction <maximumf>, %41, %cst_27 [1] : vector<2x8xf32> to vector<2xf32>
    %44 = vector.shape_cast %43 : vector<2xf32> to vector<2x1xf32>
    %45 = vector.broadcast %44 : vector<2x1xf32> to vector<2x8xf32>
    %46 = arith.cmpf oeq, %41, %45 : vector<2x8xf32>
    %c8_i32 = arith.constant 8 : i32
    %47 = vector.broadcast %c8_i32 : i32 to vector<2x8xi32>
    %48 = arith.select %46, %42, %47 : vector<2x8xi1>, vector<2x8xi32>
    %cst_28 = arith.constant dense<2147483647> : vector<2xi32>
    %49 = vector.multi_reduction <minsi>, %48, %cst_28 [1] : vector<2x8xi32> to vector<2xi32>
    %50 = vector.shape_cast %49 : vector<2xi32> to vector<2x1xi32>
    %c0_29 = arith.constant 0 : index
    %c0_30 = arith.constant 0 : index
    %51 = vector.load %arg11[%c0_29, %c0_30] : memref<2x1xi32, #tpu.memory_space<vmem>>, vector<2x1xi32>
    tpu.vector_store %arg11[%c0_29, %c0_30], %50 {strides = array<i32>} : memref<2x1xi32, #tpu.memory_space<vmem>>, vector<2x1xi32>,
    %52 = tpu.iota {dimensions = array<i32: 0>} : vector<2x8xi32>
    %c2_i32 = arith.constant 2 : i32
    %53 = arith.muli %arg0, %c2_i32 : i32
    %54 = vector.broadcast %53 : i32 to vector<2x8xi32>
    %55 = arith.addi %52, %54 : vector<2x8xi32>
    %c2_i32_31 = arith.constant 2 : i32
    %56 = vector.broadcast %c2_i32_31 : i32 to vector<2x8xi32>
    %57 = arith.cmpi slt, %55, %56 : vector<2x8xi32>
    %cst_32 = arith.constant -1.000000e+00 : f32
    %58 = vector.broadcast %cst_32 : f32 to vector<2x8xf32>
    %59 = arith.select %57, %30, %58 : vector<2x8xi1>, vector<2x8xf32>
    %cst_33 = arith.constant dense<0xFF800000> : vector<2xf32>
    %60 = vector.multi_reduction <maximumf>, %59, %cst_33 [1] : vector<2x8xf32> to vector<2xf32>
    %61 = vector.shape_cast %60 : vector<2xf32> to vector<2x1xf32>
    %cst_34 = arith.constant dense<0xFF800000> : vector<1xf32>
    %62 = vector.multi_reduction <maximumf>, %61, %cst_34 [0] : vector<2x1xf32> to vector<1xf32>
    %63 = vector.shape_cast %62 : vector<1xf32> to vector<1x1xf32>
    %c8_i32_35 = arith.constant 8 : i32
    %64 = vector.broadcast %c8_i32_35 : i32 to vector<2x8xi32>
    %65 = arith.muli %55, %64 : vector<2x8xi32>
    %66 = arith.addi %65, %42 : vector<2x8xi32>
    %67 = vector.broadcast %63 : vector<1x1xf32> to vector<2x8xf32>
    %68 = arith.cmpf oeq, %59, %67 : vector<2x8xf32>
    %c2147483647_i32 = arith.constant 2147483647 : i32
    %69 = vector.broadcast %c2147483647_i32 : i32 to vector<2x8xi32>
    %70 = arith.select %68, %66, %69 : vector<2x8xi1>, vector<2x8xi32>
    %cst_36 = arith.constant dense<2147483647> : vector<2xi32>
    %71 = vector.multi_reduction <minsi>, %70, %cst_36 [1] : vector<2x8xi32> to vector<2xi32>
    %72 = vector.shape_cast %71 : vector<2xi32> to vector<2x1xi32>
    %cst_37 = arith.constant dense<2147483647> : vector<1xi32>
    %73 = vector.multi_reduction <minsi>, %72, %cst_37 [0] : vector<2x1xi32> to vector<1xi32>
    %74 = vector.shape_cast %73 : vector<1xi32> to vector<1x1xi32>
    %75 = vector.shape_cast %63 : vector<1x1xf32> to vector<1x1x1xf32>
    %c0_38 = arith.constant 0 : index
    %c0_39 = arith.constant 0 : index
    %c0_40 = arith.constant 0 : index
    %76 = vector.load %arg12[%c0_38, %c0_39, %c0_40] : memref<1x1x1xf32, #tpu.memory_space<vmem>>, vector<1x1x1xf32>
    tpu.vector_store %arg12[%c0_38, %c0_39, %c0_40], %75 {strides = array<i32>} : memref<1x1x1xf32, #tpu.memory_space<vmem>>, vector<1x1x1xf32>,
    %77 = vector.shape_cast %74 : vector<1x1xi32> to vector<1x1x1xi32>
    %c0_41 = arith.constant 0 : index
    %c0_42 = arith.constant 0 : index
    %c0_43 = arith.constant 0 : index
    %78 = vector.load %arg13[%c0_41, %c0_42, %c0_43] : memref<1x1x1xi32, #tpu.memory_space<vmem>>, vector<1x1x1xi32>
    tpu.vector_store %arg13[%c0_41, %c0_42, %c0_43], %77 {strides = array<i32>} : memref<1x1x1xi32, #tpu.memory_space<vmem>>, vector<1x1x1xi32>,
    return
  }
  func.func @transform_0(%arg0: i32) -> (i32, i32) {
    %c0_i32 = arith.constant 0 : i32
    %c0_i32_0 = arith.constant 0 : i32
    return %arg0, %c0_i32 : i32, i32
  }
  func.func @transform_1(%arg0: i32) -> (i32, i32) {
    %c0_i32 = arith.constant 0 : i32
    %c0_i32_0 = arith.constant 0 : i32
    return %arg0, %c0_i32 : i32, i32
  }
  func.func @transform_2(%arg0: i32) -> (i32, i32) {
    %c0_i32 = arith.constant 0 : i32
    %c0_i32_0 = arith.constant 0 : i32
    %c0_i32_1 = arith.constant 0 : i32
    return %c0_i32, %c0_i32_0 : i32, i32
  }
  func.func @transform_3(%arg0: i32) -> (i32, i32) {
    %c0_i32 = arith.constant 0 : i32
    %c0_i32_0 = arith.constant 0 : i32
    %c0_i32_1 = arith.constant 0 : i32
    return %c0_i32, %c0_i32_0 : i32, i32
  }
  func.func @transform_4(%arg0: i32) -> (i32, i32) {
    %c0_i32 = arith.constant 0 : i32
    %c0_i32_0 = arith.constant 0 : i32
    %c0_i32_1 = arith.constant 0 : i32
    return %c0_i32, %c0_i32_0 : i32, i32
  }
  func.func @transform_5(%arg0: i32) -> (i32, i32) {
    %c0_i32 = arith.constant 0 : i32
    %c0_i32_0 = arith.constant 0 : i32
    %c0_i32_1 = arith.constant 0 : i32
    return %c0_i32, %c0_i32_0 : i32, i32
  }
  func.func @transform_6(%arg0: i32) -> (i32, i32) {
    %c0_i32 = arith.constant 0 : i32
    %c0_i32_0 = arith.constant 0 : i32
    %c0_i32_1 = arith.constant 0 : i32
    return %c0_i32, %c0_i32_0 : i32, i32
  }
  func.func @transform_7(%arg0: i32) -> (i32, i32) {
    %c0_i32 = arith.constant 0 : i32
    %c0_i32_0 = arith.constant 0 : i32
    %c0_i32_1 = arith.constant 0 : i32
    return %c0_i32, %c0_i32_0 : i32, i32
  }
  func.func @transform_8(%arg0: i32) -> (i32, i32) {
    %c0_i32 = arith.constant 0 : i32
    %c0_i32_0 = arith.constant 0 : i32
    return %arg0, %c0_i32 : i32, i32
  }
  func.func @transform_9(%arg0: i32) -> (i32, i32) {
    %c0_i32 = arith.constant 0 : i32
    %c0_i32_0 = arith.constant 0 : i32
    return %arg0, %c0_i32 : i32, i32
  }
  func.func @transform_10(%arg0: i32) -> (i32, i32) {
    %c0_i32 = arith.constant 0 : i32
    %c0_i32_0 = arith.constant 0 : i32
    return %arg0, %c0_i32 : i32, i32
  }
  func.func @transform_11(%arg0: i32) -> (i32, i32, i32) {
    %c0_i32 = arith.constant 0 : i32
    %c0_i32_0 = arith.constant 0 : i32
    %c0_i32_1 = arith.constant 0 : i32
    return %arg0, %c0_i32, %c0_i32_0 : i32, i32, i32
  }
  func.func @transform_12(%arg0: i32) -> (i32, i32, i32) {
    %c0_i32 = arith.constant 0 : i32
    %c0_i32_0 = arith.constant 0 : i32
    %c0_i32_1 = arith.constant 0 : i32
    return %arg0, %c0_i32, %c0_i32_0 : i32, i32, i32
  }
}

</mosaic_0001>

<llo_original>
// kernel: actor_forward.1
$region0: #{actor_forward.1}
  #allocation0 [shape = 'u32[]', space=smem, size = 0x4, offset = 0x4, fixed_abs, tag = 'smem constant byte address 0x4 - core index']
  #allocation1 [shape = 'u32[72,128]{1,0:T(1,128)}', space=vmem, size = 0x9000, scoped, tag = 'internal scratch']
  %s0 = inlined_call_operand.vmem [shape: bf16[2,16], index: 0, kind: input, shape index: {}]
  %s1 = inlined_call_operand.vmem [shape: f32[2,8], index: 1, kind: input, shape index: {}]
  %s2 = inlined_call_operand.vmem [shape: bf16[16,128], index: 2, kind: input, shape index: {}]
  %s3 = inlined_call_operand.vmem [shape: f32[1,128], index: 3, kind: input, shape index: {}]
  %s4 = inlined_call_operand.vmem [shape: bf16[128,128], index: 4, kind: input, shape index: {}]
  %s5 = inlined_call_operand.vmem [shape: f32[1,128], index: 5, kind: input, shape index: {}]
  %s6 = inlined_call_operand.vmem [shape: bf16[128,8], index: 6, kind: input, shape index: {}]
  %s7 = inlined_call_operand.vmem [shape: f32[1,8], index: 7, kind: input, shape index: {}]
  %s8 = inlined_call_operand.hbm [shape: f32[2,8], index: 8, kind: output, shape index: {0}]
  %s9 = inlined_call_operand.hbm [shape: f32[2,8], index: 9, kind: output, shape index: {1}]
  %s10 = inlined_call_operand.vmem [shape: s32[2,1], index: 10, kind: output, shape index: {2}]
  %s11 = inlined_call_operand.hbm [shape: f32[1,1,1], index: 11, kind: output, shape index: {3}]
  %s12 = inlined_call_operand.hbm [shape: s32[1,1,1], index: 12, kind: output, shape index: {4}]
  %13 = xla_tuple %s8, %s9, %s10, %s11, %s12
  %s14 = sld [smem:[#allocation0]]
  $region74: #{actor_forward.1} parent=0
    _
  %s16 = ssub.s32 1, %s14
  %s17 = scalar_select 0, %s16, %s14
  $region1: #{actor_forward.1} parent=0
    #allocation2 [shape = 'u8[1024]{0}', space=vmem, size = 0x400, scoped, tag = 'output window, operand 0, single buffered']
    #allocation3 [shape = 's32[1]{0}', space=sflag, size = 0x4, scoped, tag = 'scoped memory for actor_forward.1']
    #allocation4 [shape = 'u8[1024]{0}', space=vmem, size = 0x400, scoped, tag = 'output window, operand 1, single buffered']
    #allocation5 [shape = 's32[1]{0}', space=sflag, size = 0x4, scoped, tag = 'scoped memory for actor_forward.1']
    #allocation6 [shape = 'u8[512]{0}', space=vmem, size = 0x400, scoped, tag = 'output window, operand 3, single buffered']
    #allocation7 [shape = 'u8[512]{0}', space=vmem, size = 0x400, scoped, tag = 'output window, operand 4, single buffered']
    #allocation8 [shape = 's32[1]{0}', space=sflag, size = 0x4, scoped, tag = 'scoped memory for actor_forward.1']
    %18 = vsyncpa [#allocation3], 0
    %19 = vsyncpa [#allocation5], 0
    %20 = vsyncpa [#allocation8], 0
    // Predicated region
    $region2: #{actor_forward.1} parent=1 // pred_check
      _
    $region3: #{actor_forward.1} parent=1 // pred_check_branch
      %22 = sbr.rel (0) target = $region5
    $region4: #{actor_forward.1} parent=1 // pred_region
      _
    $region5: #{actor_forward.1} parent=1 // pred_fallthru
      _
    // Predicated region
    $region6: #{actor_forward.1} parent=1 // pred_check
      _
    $region7: #{actor_forward.1} parent=1 // pred_check_branch
      %24 = sbr.rel (0) target = $region9
    $region8: #{actor_forward.1} parent=1 // pred_region
      _
    $region9: #{actor_forward.1} parent=1 // pred_fallthru
      _
    // Predicated region
    $region10: #{actor_forward.1} parent=1 // pred_check
      _
    $region11: #{actor_forward.1} parent=1 // pred_check_branch
      %26 = sbr.rel (0) target = $region13
    $region12: #{actor_forward.1} parent=1 // pred_region
      _
    $region13: #{actor_forward.1} parent=1 // pred_fallthru
      _
    // Predicated region
    $region14: #{actor_forward.1} parent=1 // pred_check
      _
    $region15: #{actor_forward.1} parent=1 // pred_check_branch
      %28 = sbr.rel (0) target = $region17
    $region16: #{actor_forward.1} parent=1 // pred_region
      _
    $region17: #{actor_forward.1} parent=1 // pred_fallthru
      _
    // Predicated region
    $region18: #{actor_forward.1} parent=1 // pred_check
      _
    $region19: #{actor_forward.1} parent=1 // pred_check_branch
      %30 = sbr.rel (0) target = $region21
    $region20: #{actor_forward.1} parent=1 // pred_region
      _
    $region21: #{actor_forward.1} parent=1 // pred_fallthru
      _
    // Predicated region
    $region22: #{actor_forward.1} parent=1 // pred_check
      _
    $region23: #{actor_forward.1} parent=1 // pred_check_branch
      %32 = sbr.rel (0) target = $region25
    $region24: #{actor_forward.1} parent=1 // pred_region
      _
    $region25: #{actor_forward.1} parent=1 // pred_fallthru
      _
    // Predicated region
    $region26: #{actor_forward.1} parent=1 // pred_check
      _
    $region27: #{actor_forward.1} parent=1 // pred_check_branch
      %34 = sbr.rel (0) target = $region29
    $region28: #{actor_forward.1} parent=1 // pred_region
      _
    $region29: #{actor_forward.1} parent=1 // pred_fallthru
      _
    // Predicated region
    $region30: #{actor_forward.1} parent=1 // pred_check
      _
    $region31: #{actor_forward.1} parent=1 // pred_check_branch
      %36 = sbr.rel (0) target = $region33
    $region32: #{actor_forward.1} parent=1 // pred_region
      _
    $region33: #{actor_forward.1} parent=1 // pred_fallthru
      _
    %v38 = vld [vmem:[%s0] sm:$0x1]
    %v39 = vld [vmem:[%s2] sm:$0xf]
    %v40 = vld [vmem:[%s2 + $0x4] sm:$0xf]
    %v41 = vld [vmem:[%s3] sm:$0x1]
    %v43 = vperm.slane %v41, 0
    %v47 = vunpack.c.l.b16 %v39
    %v48 = vunpack.c.l.b16 %v40
    %v49 = vpack.c.b16 %v48, %v47
    %vm51 = vcmask 130048
    %v53 = vsel %vm51, %v38, 0
    %55 = vmatpush.bf16.msra.mxu0 0
    %56 = vmatpush.bf16.msra.mxu0 0
    %57 = vmatpush.bf16.msra.mxu0 0
    %58 = vmatpush.bf16.msra.mxu0 0
    %59 = vmatpush.bf16.msra.mxu0 0
    %60 = vmatpush.bf16.msra.mxu0 0
    %61 = vmatpush.bf16.msra.mxu0 0
    %62 = vmatpush.bf16.msra.mxu0 %v49
    %63 = vmatmul.bf16.gmra.mxu0 %v53
    %v64 = vpop.f32.mrf.mxu0
    %v65 = vadd.f32 %v43, %v64
    %v66 = vpop.f32.mrf.mxu0
    %67 = vdwg.mxu0
    %v68 = vmax.f32 %v65, 0.0
    %v69 = vpack.c.bf16 %v68, %v68
    %v70 = vld [vmem:[%s4] sm:$0xf]
    %v71 = vld [vmem:[%s4 + $0x4] sm:$0xf]
    %v72 = vld [vmem:[%s4 + $0x8] sm:$0xf]
    %v73 = vld [vmem:[%s4 + $0xc] sm:$0xf]
    %v74 = vld [vmem:[%s4 + $0x10] sm:$0xf]
    %v75 = vld [vmem:[%s4 + $0x14] sm:$0xf]
    %v76 = vld [vmem:[%s4 + $0x18] sm:$0xf]
    %v77 = vld [vmem:[%s4 + $0x1c] sm:$0xf]
    %v78 = vld [vmem:[%s4 + $0x20] sm:$0xf]
    %v79 = vld [vmem:[%s4 + $0x24] sm:$0xf]
    %v80 = vld [vmem:[%s4 + $0x28] sm:$0xf]
    %v81 = vld [vmem:[%s4 + $0x2c] sm:$0xf]
    %v82 = vld [vmem:[%s4 + $0x30] sm:$0xf]
    %v83 = vld [vmem:[%s4 + $0x34] sm:$0xf]
    %v84 = vld [vmem:[%s4 + $0x38] sm:$0xf]
    %v85 = vld [vmem:[%s4 + $0x3c] sm:$0xf]
    %v86 = vld [vmem:[%s5] sm:$0x1]
    %v88 = vperm.slane %v86, 0
    %v106 = vunpack.c.l.b16 %v70
    %v107 = vunpack.c.l.b16 %v71
    %v108 = vunpack.c.l.b16 %v72
    %v109 = vunpack.c.l.b16 %v73
    %v110 = vunpack.c.l.b16 %v74
    %v111 = vunpack.c.l.b16 %v75
    %v112 = vunpack.c.l.b16 %v76
    %v113 = vunpack.c.l.b16 %v77
    %v114 = vunpack.c.l.b16 %v78
    %v115 = vunpack.c.l.b16 %v79
    %v116 = vunpack.c.l.b16 %v80
    %v117 = vunpack.c.l.b16 %v81
    %v118 = vunpack.c.l.b16 %v82
    %v119 = vunpack.c.l.b16 %v83
    %v120 = vunpack.c.l.b16 %v84
    %v121 = vunpack.c.l.b16 %v85
    %v122 = vpack.c.b16 %v107, %v106
    %v123 = vpack.c.b16 %v109, %v108
    %v124 = vpack.c.b16 %v111, %v110
    %v125 = vpack.c.b16 %v113, %v112
    %v126 = vpack.c.b16 %v115, %v114
    %v127 = vpack.c.b16 %v117, %v116
    %v128 = vpack.c.b16 %v119, %v118
    %v129 = vpack.c.b16 %v121, %v120
    %138 = vmatpush.bf16.msra.mxu0 %v129
    %139 = vmatpush.bf16.msra.mxu0 %v128
    %140 = vmatpush.bf16.msra.mxu0 %v127
    %141 = vmatpush.bf16.msra.mxu0 %v126
    %142 = vmatpush.bf16.msra.mxu0 %v125
    %143 = vmatpush.bf16.msra.mxu0 %v124
    %144 = vmatpush.bf16.msra.mxu0 %v123
    %145 = vmatpush.bf16.msra.mxu0 %v122
    %146 = vmatmul.bf16.gmra.mxu0 %v69
    %v147 = vpop.f32.mrf.mxu0
    %v148 = vadd.f32 %v88, %v147
    %v149 = vpop.f32.mrf.mxu0
    %150 = vdwg.mxu0
    %v151 = vmax.f32 %v148, 0.0
    %v152 = vpack.c.bf16 %v151, %v151
    %v153 = vld [vmem:[%s6] sm:$0xf]
    %v154 = vld [vmem:[%s6 + $0x4] sm:$0xf]
    %v155 = vld [vmem:[%s6 + $0x8] sm:$0xf]
    %v156 = vld [vmem:[%s6 + $0xc] sm:$0xf]
    %v157 = vld [vmem:[%s6 + $0x10] sm:$0xf]
    %v158 = vld [vmem:[%s6 + $0x14] sm:$0xf]
    %v159 = vld [vmem:[%s6 + $0x18] sm:$0xf]
    %v160 = vld [vmem:[%s6 + $0x1c] sm:$0xf]
    %v161 = vld [vmem:[%s6 + $0x20] sm:$0xf]
    %v162 = vld [vmem:[%s6 + $0x24] sm:$0xf]
    %v163 = vld [vmem:[%s6 + $0x28] sm:$0xf]
    %v164 = vld [vmem:[%s6 + $0x2c] sm:$0xf]
    %v165 = vld [vmem:[%s6 + $0x30] sm:$0xf]
    %v166 = vld [vmem:[%s6 + $0x34] sm:$0xf]
    %v167 = vld [vmem:[%s6 + $0x38] sm:$0xf]
    %v168 = vld [vmem:[%s6 + $0x3c] sm:$0xf]
    %v169 = vld [vmem:[%s7] sm:$0x1]
    %v171 = vperm.slane %v169, 0
    %v189 = vunpack.c.l.b16 %v153
    %v190 = vunpack.c.l.b16 %v154
    %v191 = vunpack.c.l.b16 %v155
    %v192 = vunpack.c.l.b16 %v156
    %v193 = vunpack.c.l.b16 %v157
    %v194 = vunpack.c.l.b16 %v158
    %v195 = vunpack.c.l.b16 %v159
    %v196 = vunpack.c.l.b16 %v160
    %v197 = vunpack.c.l.b16 %v161
    %v198 = vunpack.c.l.b16 %v162
    %v199 = vunpack.c.l.b16 %v163
    %v200 = vunpack.c.l.b16 %v164
    %v201 = vunpack.c.l.b16 %v165
    %v202 = vunpack.c.l.b16 %v166
    %v203 = vunpack.c.l.b16 %v167
    %v204 = vunpack.c.l.b16 %v168
    %v205 = vpack.c.b16 %v190, %v189
    %v206 = vpack.c.b16 %v192, %v191
    %v207 = vpack.c.b16 %v194, %v193
    %v208 = vpack.c.b16 %v196, %v195
    %v209 = vpack.c.b16 %v198, %v197
    %v210 = vpack.c.b16 %v200, %v199
    %v211 = vpack.c.b16 %v202, %v201
    %v212 = vpack.c.b16 %v204, %v203
    %221 = vmatpush.bf16.msra.mxu0 %v212
    %222 = vmatpush.bf16.msra.mxu0 %v211
    %223 = vmatpush.bf16.msra.mxu0 %v210
    %224 = vmatpush.bf16.msra.mxu0 %v209
    %225 = vmatpush.bf16.msra.mxu0 %v208
    %226 = vmatpush.bf16.msra.mxu0 %v207
    %227 = vmatpush.bf16.msra.mxu0 %v206
    %228 = vmatpush.bf16.msra.mxu0 %v205
    %229 = vmatmul.bf16.gmra.mxu0 %v152
    %v230 = vpop.f32.mrf.mxu0
    %v231 = vadd.f32 %v171, %v230
    %v232 = vpop.f32.mrf.mxu0
    %233 = vdwg.mxu0
    %vm234 = vcmask 58368
    %v235 = vsel %vm234, %v231, -inf
    %236 = vmax.xlane.f32.xlu0 %v235
    %v237 = vpop.xlane.xlu0 %236
    %v238 = vsub.f32 %v231, %v237
    %v239 = vmul.f32 %v238, 1.442695
    %v240 = vpow.pop %v239
    %v241 = vsel %vm234, %v240, 0.0
    %242 = vadd.xlane.f32.xlu0 %v241
    %v243 = vpop.xlane.xlu0 %242
    %v244 = vrcp.pop %v243
    %v245 = vmul.f32 %v243, %v244
    %v246 = vsub.f32 1.0, %v245
    %v247 = vmul.f32 %v244, %v246
    %v248 = vadd.f32 %v244, %v247
    %vm249 = vweird.f32 %v243
    %vm250 = vweird.f32 %v244
    %vm251 = vmor %vm249, %vm250
    %v252 = vsel %vm251, %v244, %v248
    %v253 = vand.u32 2147483647, %v243
    %vm254 = vcmp.eq.f32.partialorder %v253, 8.507059e+37
    %v255 = vand.u32 %v243, 2147483648
    %v256 = vor.u32 1.1754944e-38, %v255
    %v257 = vsel %vm254, %v256, %v252
    %v258 = vmul.f32 %v240, %v257
    %259 = vst.msk [vmem:[#allocation2] sm:$0x3] %vm234, %v258
    %v260 = vlog2.pop %v243
    %v261 = vmul.f32 %v260, 0.6931472
    %v262 = vsub.f32 %v238, %v261
    %vm263 = vcmp.eq.f32.partialorder %v258, 0.0
    %v264 = vsel %vm263, -18.420681, %v262
    %265 = vst.msk [vmem:[#allocation4] sm:$0x3] %vm234, %v264
    %v266 = vld [vmem:[%s1] sm:$0x3]
    %v267 = vadd.f32 %v238, %v266
    %v268 = vlaneseq
    %v269 = vand.u32 %v268, 127
    %v270 = vsel %vm234, %v267, -inf
    %271 = vmax.xlane.f32.xlu0 %v270
    %v272 = vpop.xlane.xlu0 %271
    %vm273 = vcmp.eq.f32.partialorder %v267, %v272
    %v274 = vsel %vm273, %v269, 8
    %v275 = vsel %vm234, %v274, 2147483647
    %v276 = vand.u32 %v275, 65535
    %v277 = vshra.s32 %v275, 16
    %v278 = vcvt.s32.f32 %v276
    %v279 = vcvt.s32.f32 %v277
    %280 = vmin.xlane.f32.xlu0 %v279
    %v281 = vpop.xlane.xlu0 %280
    %vm282 = vcmp.eq.f32.partialorder %v279, %v281
    %v283 = vsel %vm282, %v278, inf
    %284 = vmin.xlane.f32.xlu0 %v283
    %v285 = vpop.xlane.xlu0 %284
    %v286 = vcvt.f32.s32 %v285
    %v287 = vcvt.f32.s32 %v281
    %v288 = vshll.u32 %v287, 16
    %v289 = vadd.s32 %v288, %v286
    %vm290 = vcmask 1024
    %291 = vst.msk [vmem:[%s10] sm:$0x3] %vm290, %v289
    %v292 = vlaneseq
    %v293 = vshrl.u32 %v292, 7
    %s294 = smul.u32 0, 2
    %v295 = vstv %s294
    %v296 = vadd.s32 %v293, %v295
    %vm297 = vcmp.lt.s32.totalorder %v296, 2
    %v298 = vsel %vm297, %v258, -1.0
    %v299 = vsel %vm234, %v298, -inf
    %300 = vmax.xlane.f32.xlu0 %v299
    %v301 = vpop.xlane.xlu0 %300
    %vm302 = vcmask 1041408
    %v303 = vsel %vm302, %v301, -inf
    %v304 = vrot.slane %v303, 4
    %v305 = vmax.f32 %v303, %v304
    %v306 = vrot.slane %v305, 2
    %v307 = vmax.f32 %v305, %v306
    %v308 = vrot.slane %v307, 1
    %v309 = vmax.f32 %v307, %v308
    %v310 = vmul.u32 %v296, 8
    %v311 = vadd.s32 %v310, %v269
    %vm312 = vcmp.eq.f32.partialorder %v298, %v309
    %v313 = vsel %vm312, %v311, 2147483647
    %v314 = vsel %vm234, %v313, 2147483647
    %v315 = vand.u32 %v314, 65535
    %v316 = vshra.s32 %v314, 16
    %v317 = vcvt.s32.f32 %v315
    %v318 = vcvt.s32.f32 %v316
    %319 = vmin.xlane.f32.xlu0 %v318
    %v320 = vpop.xlane.xlu0 %319
    %vm321 = vcmp.eq.f32.partialorder %v318, %v320
    %v322 = vsel %vm321, %v317, inf
    %323 = vmin.xlane.f32.xlu0 %v322
    %v324 = vpop.xlane.xlu0 %323
    %v325 = vcvt.f32.s32 %v324
    %v326 = vcvt.f32.s32 %v320
    %v327 = vshll.u32 %v326, 16
    %v328 = vadd.s32 %v327, %v325
    %v329 = vsel %vm302, %v328, 2147483647
    %v330 = vrot.slane %v329, 4
    %vm331 = vcmp.lt.s32.totalorder %v329, %v330
    %v332 = vsel %vm331, %v329, %v330
    %v333 = vrot.slane %v332, 2
    %vm334 = vcmp.lt.s32.totalorder %v332, %v333
    %v335 = vsel %vm334, %v332, %v333
    %v336 = vrot.slane %v335, 1
    %vm337 = vcmp.lt.s32.totalorder %v335, %v336
    %v338 = vsel %vm337, %v335, %v336
    %vm339 = vcmask 0
    %340 = vst.msk [vmem:[#allocation6] sm:$0x1] %vm339, %v309
    %341 = vst.msk [vmem:[#allocation7] sm:$0x1] %vm339, %v338
    // Predicated region
    $region34: #{actor_forward.1} parent=1 // pred_check
      _
    $region35: #{actor_forward.1} parent=1 // pred_check_branch
      %343 = sbr.rel (0) target = $region37
    $region36: #{actor_forward.1} parent=1 // pred_region
      %345 = vsyncadd [#allocation3], 0
      %s347 = sshll.u32 [#allocation2], 4
      %s348 = int_to_ptr.vmem [resolvable:$true] %s347
      %s349 = sshll.u32 %s8, 4
      %s350 = int_to_ptr.hbm [resolvable:$true] %s349
      %352 = dma.vmem_to_hbm [thread:$0]  %s348, 32, %s350, [#allocation3]
    $region37: #{actor_forward.1} parent=1 // pred_fallthru
      _
    // Predicated region
    $region38: #{actor_forward.1} parent=1 // pred_check
      _
    $region39: #{actor_forward.1} parent=1 // pred_check_branch
      %354 = sbr.rel (0) target = $region41
    $region40: #{actor_forward.1} parent=1 // pred_region
      %356 = vsyncadd [#allocation5], 0
      %s358 = sshll.u32 [#allocation4], 4
      %s359 = int_to_ptr.vmem [resolvable:$true] %s358
      %s360 = sshll.u32 %s9, 4
      %s361 = int_to_ptr.hbm [resolvable:$true] %s360
      %363 = dma.vmem_to_hbm [thread:$0]  %s359, 32, %s361, [#allocation5]
    $region41: #{actor_forward.1} parent=1 // pred_fallthru
      _
    // Predicated region
    $region42: #{actor_forward.1} parent=1 // pred_check
      _
    $region43: #{actor_forward.1} parent=1 // pred_check_branch
      %365 = sbr.rel (0) target = $region45
    $region44: #{actor_forward.1} parent=1 // pred_region
      _
    $region45: #{actor_forward.1} parent=1 // pred_fallthru
      _
    // Predicated region
    $region46: #{actor_forward.1} parent=1 // pred_check
      _
    $region47: #{actor_forward.1} parent=1 // pred_check_branch
      %367 = sbr.rel (0) target = $region49
    $region48: #{actor_forward.1} parent=1 // pred_region
      %369 = vsyncadd [#allocation5], 0
      %s371 = sshll.u32 [#allocation6], 4
      %s372 = int_to_ptr.vmem [resolvable:$true] %s371
      %s373 = sshll.u32 %s11, 4
      %s374 = int_to_ptr.hbm [resolvable:$true] %s373
      %376 = dma.vmem_to_hbm [thread:$0]  %s372, 16, %s374, [#allocation5]
    $region49: #{actor_forward.1} parent=1 // pred_fallthru
      _
    // Predicated region
    $region50: #{actor_forward.1} parent=1 // pred_check
      _
    $region51: #{actor_forward.1} parent=1 // pred_check_branch
      %378 = sbr.rel (0) target = $region53
    $region52: #{actor_forward.1} parent=1 // pred_region
      %380 = vsyncadd [#allocation8], 0
      %s382 = sshll.u32 [#allocation7], 4
      %s383 = int_to_ptr.vmem [resolvable:$true] %s382
      %s384 = sshll.u32 %s12, 4
      %s385 = int_to_ptr.hbm [resolvable:$true] %s384
      %387 = dma.vmem_to_hbm [thread:$0]  %s383, 16, %s385, [#allocation8]
    $region53: #{actor_forward.1} parent=1 // pred_fallthru
      _
    // Predicated region
    $region54: #{actor_forward.1} parent=1 // pred_check
      _
    $region55: #{actor_forward.1} parent=1 // pred_check_branch
      %389 = sbr.rel (0) target = $region57
    $region56: #{actor_forward.1} parent=1 // pred_region
      %391 = dma.done [#allocation3], 32
    $region57: #{actor_forward.1} parent=1 // pred_fallthru
      _
    // Predicated region
    $region58: #{actor_forward.1} parent=1 // pred_check
      _
    $region59: #{actor_forward.1} parent=1 // pred_check_branch
      %393 = sbr.rel (0) target = $region61
    $region60: #{actor_forward.1} parent=1 // pred_region
      %395 = dma.done [#allocation5], 32
    $region61: #{actor_forward.1} parent=1 // pred_fallthru
      _
    // Predicated region
    $region62: #{actor_forward.1} parent=1 // pred_check
      _
    $region63: #{actor_forward.1} parent=1 // pred_check_branch
      %397 = sbr.rel (0) target = $region65
    $region64: #{actor_forward.1} parent=1 // pred_region
      _
    $region65: #{actor_forward.1} parent=1 // pred_fallthru
      _
    // Predicated region
    $region66: #{actor_forward.1} parent=1 // pred_check
      _
    $region67: #{actor_forward.1} parent=1 // pred_check_branch
      %399 = sbr.rel (0) target = $region69
    $region68: #{actor_forward.1} parent=1 // pred_region
      %401 = dma.done [#allocation5], 16
    $region69: #{actor_forward.1} parent=1 // pred_fallthru
      _
    // Predicated region
    $region70: #{actor_forward.1} parent=1 // pred_check
      _
    $region71: #{actor_forward.1} parent=1 // pred_check_branch
      %403 = sbr.rel (0) target = $region73
    $region72: #{actor_forward.1} parent=1 // pred_region
      %405 = dma.done [#allocation8], 16
    $region73: #{actor_forward.1} parent=1 // pred_fallthru
      _
    %406 = vsyncpa [#allocation3], 1
    %407 = vsyncpa [#allocation5], 1
    %408 = vsyncpa [#allocation8], 1

</llo_original>
